<compile_context>
chip_gen: v5e
topology: v5e:2x2
jax: 0.10.0
libtpu: 0.0.40
codegen_flags: <defaults>
</compile_context>

<pallas_src>
import functools

import jax
import jax.numpy as jnp
from jax.experimental import pallas as pl
from jax.experimental.pallas import tpu as pltpu


# ---------------------------------------------------------------------------
# Kernel
# ---------------------------------------------------------------------------
def _cmk_kernel(xr_ref, xc_ref, pos_ref, neg_ref, tn_ref, fn_ref,
                out_ref, acc_ref, *, inv_t2):
    """One (row_tile, col_tile) block of the CMK loss.

    xr_ref  : [TM, D]   row block of features (compute dtype, bf16 or f32)
    xc_ref  : [TN, D]   column block of features
    *_ref   : [TM, TN]  int8 indicator-mask tiles
    out_ref : [8, 128]  f32 per-core-chunk accumulator block, lanes 0..4 hold
                        [sum(mlpp), sum(pos*K), sum(neg*K), sum(tn*K), sum(fn*K)]
    acc_ref : [TM, 8]   f32 per-row partials across the column axis:
                        [denom, pos.K, pos, neg.K, tn.K, fn.K, 0, 0]
    """
    i = pl.program_id(1)                       # row tile within the core chunk
    j = pl.program_id(2)                       # column tile (reduction axis)
    last_j = pl.num_programs(2) - 1

    @pl.when((i == 0) & (j == 0))
    def _init_out():
        out_ref[...] = jnp.zeros_like(out_ref)

    @pl.when(j == 0)
    def _init_acc():
        acc_ref[...] = jnp.zeros_like(acc_ref)

    # Gaussian kernel block on the MXU.  The EuDist2 quirk of the reference
    # (both squared-norm terms use row i) gives
    #   K_ij = exp(-(2*aa_i - 2*ab_ij)/(2*t^2)) = exp(ab_ij/t^2 - aa_i/t^2),
    # so the 1/t^2 scale is folded into the [TM, D] row block (cheap) and the
    # dist intermediate is never materialised.
    xr = xr_ref[...]                                           # [TM, D]
    xc = xc_ref[...]                                           # [TN, D]
    xs = xr * inv_t2                                           # scaled rows
    ab = jax.lax.dot_general(xs, xc, (((1,), (1,)), ((), ())),
                             preferred_element_type=jnp.float32)   # [TM, TN]
    aa = jnp.sum(xs.astype(jnp.float32) * xr.astype(jnp.float32),
                 axis=1, keepdims=True)                        # [TM, 1]
    kmat = jnp.exp(ab - aa)                                    # f32 [TM, TN]

    # int8 indicator masks -> f32 (cast-on-load is cheap VPU filler).
    pos = pos_ref[...].astype(jnp.float32)
    neg = neg_ref[...].astype(jnp.float32)
    tn = tn_ref[...].astype(jnp.float32)
    fn = fn_ref[...].astype(jnp.float32)

    # logits = exp(K); the N^2 log pass is removed algebraically:
    #   mean_log_prob_pos_i = log(denom_i) - (pos.K)_i / pos_i.sum()
    # NOTE: like the reference, exp(exp(.)) can overflow f32 for small t /
    # large feature norms; no extra stabilization is added to keep semantics.
    logits = jnp.exp(kmat)
    denom_p = jnp.sum(logits * (pos + neg), axis=1, keepdims=True)  # [TM, 1]
    pk_p = jnp.sum(pos * kmat, axis=1, keepdims=True)
    pr_p = jnp.sum(pos, axis=1, keepdims=True)
    nk_p = jnp.sum(neg * kmat, axis=1, keepdims=True)
    tk_p = jnp.sum(tn * kmat, axis=1, keepdims=True)
    fk_p = jnp.sum(fn * kmat, axis=1, keepdims=True)

    # Single coalesced per-row partial update per column step.
    z = jnp.zeros_like(denom_p)
    acc_ref[...] += jnp.concatenate(
        [denom_p, pk_p, pr_p, nk_p, tk_p, fk_p, z, z], axis=1)     # [TM, 8]

    @pl.when(j == last_j)
    def _finalize_rows():
        acc = acc_ref[...]
        denom, pk, pr = acc[:, 0:1], acc[:, 1:2], acc[:, 2:3]
        nk, tk, fk = acc[:, 3:4], acc[:, 4:5], acc[:, 5:6]
        mlpp = jnp.log(denom) - pk / pr                            # [TM, 1]
        vals = jnp.concatenate(
            [jnp.sum(mlpp, keepdims=True),
             jnp.sum(pk, keepdims=True),
             jnp.sum(nk, keepdims=True),
             jnp.sum(tk, keepdims=True),
             jnp.sum(fk, keepdims=True)], axis=1)                  # [1, 5]
        out_ref[0:1, 0:5] += vals


# ---------------------------------------------------------------------------
# Tiling / budget helpers
# ---------------------------------------------------------------------------
def _tpu_budget():
    """Generation-aware (vmem_limit_bytes, max_row_tile)."""
    vmem_cap = 128 * 1024 * 1024
    try:
        info = pltpu.get_tpu_info()
        vmem_cap = int(getattr(info, "vmem_capacity_bytes", vmem_cap))
    except Exception:
        pass
    if vmem_cap <= 64 * 1024 * 1024:            # v7x-class: 64 MiB physical
        vmem_limit = vmem_cap - 8 * 1024 * 1024
        max_tm = 256
    else:                                       # v5e / v6e: 128 MiB physical
        vmem_limit = min(vmem_cap - 24 * 1024 * 1024, 100 * 1024 * 1024)
        max_tm = 512
    return max(int(vmem_limit), 32 * 1024 * 1024), max_tm


def _largest_aligned_divisor(n, preferred, align):
    """Largest multiple of `align` dividing n, capped near `preferred`."""
    if n % align != 0:
        # TODO(synk): pad ragged N instead of falling back to one full block.
        return n
    if n <= preferred:
        return n
    t = max((preferred // align) * align, align)
    while n % t != 0:
        t -= align
    return t


def _pick_row_tile(n, max_tm):
    for align in (32, 8):        # int8 masks pack 32 rows/vreg; 8 is the floor
        if n % align == 0:
            return _largest_aligned_divisor(n, max_tm, align)
    return n


def _pick_col_tile(n, max_tn=512):
    if n % 128 == 0:
        return _largest_aligned_divisor(n, max_tn, 128)
    return n


# ---------------------------------------------------------------------------
# Wrapper
# ---------------------------------------------------------------------------
def cmk_loss(feature, pos_mask, neg_mask, true_neg_mask, false_neg_mask,
             kernel_options, *, compute_dtype=jnp.bfloat16):
    """Pallas implementation of CMKLoss.forward (Gaussian kernel).

    feature: list of [num_smp, D] arrays (one per view).  Masks are assumed to
    be 0/1 indicator matrices and are shipped as int8 (4x less HBM traffic).

    compute_dtype: bf16 by default (MXU-native Gram on v6e/v7x, halved feature
    VMEM); pass jnp.float32 to reproduce the PyTorch reference numerics.

    Returns (loss_con, pos_avg, neg_avg, true_neg_avg, false_neg_avg) matching
    the PyTorch module (last four as python floats, mimicking .item(), with a
    single packed device->host transfer).
    """
    if kernel_options["type"] != "Gaussian":
        # TODO(synk): rbf / Linear / Polynomial / Sigmoid / Cauchy / IK kernel
        # variants (rbf_kernel / iso_kernel are external helpers not defined in
        # the reference module).
        raise NotImplementedError(kernel_options["type"])

    features = jnp.concatenate(feature, axis=0).astype(compute_dtype)  # [N, D]
    n, d = features.shape
    t = float(kernel_options["t"])
    inv_t2 = 1.0 / (t * t)

    # 0/1 indicator masks -> int8.  (Non-binary weighted masks would be
    # truncated; the CMK pipeline only produces indicators.)
    masks = [m.astype(jnp.int8)
             for m in (pos_mask, neg_mask, true_neg_mask, false_neg_mask)]
    # Mask-total denominators do not depend on K -> exact int32 sums in XLA,
    # removing 3 cross-lane reductions + RMWs from every kernel step.
    mask_totals = jnp.stack(
        [jnp.sum(m, dtype=jnp.int32) for m in masks]).astype(jnp.float32)

    vmem_limit, max_tm = _tpu_budget()
    tm = _pick_row_tile(n, max_tm)
    tn = _pick_col_tile(n, 512)
    row_tiles = n // tm
    col_tiles = n // tn

    # Leading 'parallel' axis -> both v7x TensorCores (serial & harmless on
    # single-TC v5e/v6e).  Each chunk owns a contiguous range of row tiles and
    # its own (8, 128) accumulator block.
    n_chunks = 2 if (row_tiles % 2 == 0 and row_tiles >= 2) else 1
    rows_per_chunk = row_tiles // n_chunks

    kernel = functools.partial(_cmk_kernel, inv_t2=inv_t2)

    feat_row_spec = pl.BlockSpec((tm, d),
                                 lambda c, i, j: (c * rows_per_chunk + i, 0))
    feat_col_spec = pl.BlockSpec((tn, d), lambda c, i, j: (j, 0))
    mask_spec = pl.BlockSpec((tm, tn),
                             lambda c, i, j: (c * rows_per_chunk + i, j))
    out_spec = pl.BlockSpec((8, 128), lambda c, i, j: (c, 0))

    feat_bytes = int(features.size) * features.dtype.itemsize
    cost = pl.CostEstimate(
        flops=2 * n * n * d + 16 * n * n,
        transcendentals=2 * n * n,
        bytes_accessed=4 * n * n + 2 * feat_bytes + n_chunks * 8 * 128 * 4)

    out = pl.pallas_call(
        kernel,
        out_shape=jax.ShapeDtypeStruct((n_chunks * 8, 128), jnp.float32),
        grid=(n_chunks, rows_per_chunk, col_tiles),
        in_specs=[feat_row_spec, feat_col_spec] + [mask_spec] * 4,
        out_specs=out_spec,
        scratch_shapes=[pltpu.VMEM((tm, 8), jnp.float32)],
        compiler_params=pltpu.CompilerParams(
            dimension_semantics=("parallel", "arbitrary", "arbitrary"),
            vmem_limit_bytes=vmem_limit),
        cost_estimate=cost,
    )(features, features, *masks)

    # Combine per-core-chunk partial sums and finalize on tiny arrays.
    sums = jnp.sum(out[0::8, 0:5], axis=0)                      # [5]
    loss_con = sums[0] / float(n)               # stays on device (like torch)
    avgs = sums[1:5] / mask_totals
    host = jax.device_get(avgs)                 # ONE device->host sync
    return (loss_con, float(host[0]), float(host[1]),
            float(host[2]), float(host[3]))


# ---------------------------------------------------------------------------
# Pure-JAX reference mirroring the PyTorch code (for verification)
# ---------------------------------------------------------------------------
def _reference(feature, pos, neg, tn, fn, t):
    x = jnp.concatenate(feature, axis=0).astype(jnp.float32)
    aa = jnp.sum(x * x, axis=1, keepdims=True)
    ab = x @ x.T
    dist = aa + aa - 2.0 * ab           # same EuDist2 broadcast quirk
    kmat = jnp.exp(-dist / (2.0 * t * t))
    logits = jnp.exp(kmat)
    logits_mask = pos + neg
    log_prob = jnp.log(logits) - jnp.log(
        jnp.sum(logits * logits_mask, axis=1, keepdims=True))
    mlpp = -jnp.sum(pos * log_prob, axis=1) / jnp.sum(pos, axis=1)
    loss = jnp.mean(mlpp)
    return (loss,
            jnp.sum(kmat * pos) / jnp.sum(pos),
            jnp.sum(kmat * neg) / jnp.sum(neg),
            jnp.sum(kmat * tn) / jnp.sum(tn),
            jnp.sum(kmat * fn) / jnp.sum(fn))


if __name__ == "__main__":
    num_view, num_smp, dim = 2, 8, 32
    n = num_view * num_smp

    key = jax.random.PRNGKey(0)
    kf, km = jax.random.split(key)
    feature = [
        0.3 * jax.random.normal(jax.random.fold_in(kf, v), (num_smp, dim),
                                dtype=jnp.float32)
        for v in range(num_view)
    ]

    idx = jnp.arange(n)
    same_sample = (idx[:, None] % num_smp) == (idx[None, :] % num_smp)
    eye = jnp.eye(n, dtype=bool)
    pos_mask = (same_sample & ~eye).astype(jnp.float32)
    neg_mask = (~same_sample).astype(jnp.float32)
    bern = jax.random.bernoulli(km, 0.5, (n, n)).astype(jnp.float32)
    true_neg_mask = neg_mask * bern
    false_neg_mask = neg_mask * (1.0 - bern)

    kernel_options = {"type": "Gaussian", "t": 1.0}

    ref = _reference(feature, pos_mask, neg_mask, true_neg_mask,
                     false_neg_mask, kernel_options["t"])
    ref = [float(r) for r in ref]

    # Exact-semantics path (f32 Gram) -- tight tolerance.
    out32 = cmk_loss(feature, pos_mask, neg_mask, true_neg_mask,
                     false_neg_mask, kernel_options,
                     compute_dtype=jnp.float32)
    loss32 = jax.block_until_ready(out32[0])
    got32 = [float(loss32)] + list(out32[1:])
    for g, r in zip(got32, ref):
        assert abs(g - r) <= 1e-4 * (1.0 + abs(r)), (got32, ref)

    # Default fast path (bf16 Gram on the MXU) -- loose tolerance.
    outbf = cmk_loss(feature, pos_mask, neg_mask, true_neg_mask,
                     false_neg_mask, kernel_options)
    lossbf = jax.block_until_ready(outbf[0])
    gotbf = [float(lossbf)] + list(outbf[1:])
    for g, r in zip(gotbf, ref):
        assert abs(g - r) <= 5e-2 * (1.0 + abs(r)), (gotbf, ref)

    print("KERNEL_OK")
</pallas_src>

<mosaic_0001>
module attributes {stable_mosaic.version = 11 : i64} {
  func.func @_cmk_kernel(%arg0: i32, %arg1: i32, %arg2: i32, %arg3: memref<16x32xf32, #tpu.memory_space<vmem>>, %arg4: memref<16x32xf32, #tpu.memory_space<vmem>>, %arg5: memref<16x16xi8, #tpu.memory_space<vmem>>, %arg6: memref<16x16xi8, #tpu.memory_space<vmem>>, %arg7: memref<16x16xi8, #tpu.memory_space<vmem>>, %arg8: memref<16x16xi8, #tpu.memory_space<vmem>>, %arg9: memref<8x128xf32, #tpu.memory_space<vmem>>, %arg10: memref<16x8xf32, #tpu.memory_space<vmem>>) attributes {dimension_semantics = [#tpu.dimension_semantics<parallel>, #tpu.dimension_semantics<arbitrary>, #tpu.dimension_semantics<arbitrary>], iteration_bounds = array<i64: 1, 1, 1>, scalar_prefetch = 0 : i64, scratch_operands = 1 : i64, tpu.core_type = #tpu.core_type<tc>, window_params = [{transform_indices = @transform_0, window_bounds = array<i64: 16, 32>}, {transform_indices = @transform_1, window_bounds = array<i64: 16, 32>}, {transform_indices = @transform_2, window_bounds = array<i64: 16, 16>}, {transform_indices = @transform_3, window_bounds = array<i64: 16, 16>}, {transform_indices = @transform_4, window_bounds = array<i64: 16, 16>}, {transform_indices = @transform_5, window_bounds = array<i64: 16, 16>}, {transform_indices = @transform_6, window_bounds = array<i64: 8, 128>}]} {
    %c0_i32 = arith.constant 0 : i32
    %0 = arith.cmpi eq, %arg1, %c0_i32 : i32
    %c0_i32_0 = arith.constant 0 : i32
    %1 = arith.cmpi eq, %arg2, %c0_i32_0 : i32
    %2 = arith.andi %0, %1 : i1
    %3 = arith.extui %2 : i1 to i32
    %c0_i32_1 = arith.constant 0 : i32
    %4 = arith.cmpi ne, %3, %c0_i32_1 : i32
    scf.if %4 {
      %cst_30 = arith.constant 0.000000e+00 : f32
      %54 = vector.broadcast %cst_30 : f32 to vector<8x128xf32>
      %c0_31 = arith.constant 0 : index
      %c0_32 = arith.constant 0 : index
      %55 = vector.load %arg9[%c0_31, %c0_32] : memref<8x128xf32, #tpu.memory_space<vmem>>, vector<8x128xf32>
      tpu.vector_store %arg9[%c0_31, %c0_32], %54 {strides = array<i32>} : memref<8x128xf32, #tpu.memory_space<vmem>>, vector<8x128xf32>,
    } else {
    }
    %c0_i32_2 = arith.constant 0 : i32
    %5 = arith.cmpi eq, %arg2, %c0_i32_2 : i32
    %6 = arith.extui %5 : i1 to i32
    %c0_i32_3 = arith.constant 0 : i32
    %7 = arith.cmpi ne, %6, %c0_i32_3 : i32
    scf.if %7 {
      %cst_30 = arith.constant 0.000000e+00 : f32
      %54 = vector.broadcast %cst_30 : f32 to vector<16x8xf32>
      %c0_31 = arith.constant 0 : index
      %c0_32 = arith.constant 0 : index
      %55 = vector.load %arg10[%c0_31, %c0_32] : memref<16x8xf32, #tpu.memory_space<vmem>>, vector<16x8xf32>
      tpu.vector_store %arg10[%c0_31, %c0_32], %54 {strides = array<i32>} : memref<16x8xf32, #tpu.memory_space<vmem>>, vector<16x8xf32>,
    } else {
    }
    %c0 = arith.constant 0 : index
    %c0_4 = arith.constant 0 : index
    %8 = vector.load %arg3[%c0, %c0_4] : memref<16x32xf32, #tpu.memory_space<vmem>>, vector<16x32xf32>
    %c0_5 = arith.constant 0 : index
    %c0_6 = arith.constant 0 : index
    %9 = vector.load %arg4[%c0_5, %c0_6] : memref<16x32xf32, #tpu.memory_space<vmem>>, vector<16x32xf32>
    %cst = arith.constant 1.000000e+00 : f32
    %10 = vector.broadcast %cst : f32 to vector<16x32xf32>
    %11 = arith.mulf %8, %10 : vector<16x32xf32>
    %cst_7 = arith.constant dense<0.000000e+00> : vector<16x16xf32>
    %12 = tpu.matmul %11, %9, %cst_7 {dimension_numbers = #tpu.dot_dimension_numbers<[1], [1], [0], [0], [0, 0, 1, 0], [], []>} : vector<16x32xf32>, vector<16x32xf32>, vector<16x16xf32> -> vector<16x16xf32>
    %13 = arith.mulf %11, %8 : vector<16x32xf32>
    %cst_8 = arith.constant dense<0.000000e+00> : vector<16xf32>
    %14 = vector.multi_reduction <add>, %13, %cst_8 [1] : vector<16x32xf32> to vector<16xf32>
    %15 = vector.shape_cast %14 : vector<16xf32> to vector<16x1xf32>
    %16 = vector.broadcast %15 : vector<16x1xf32> to vector<16x16xf32>
    %17 = arith.subf %12, %16 : vector<16x16xf32>
    %18 = math.exp %17 : vector<16x16xf32>
    %c0_9 = arith.constant 0 : index
    %c0_10 = arith.constant 0 : index
    %19 = vector.load %arg5[%c0_9, %c0_10] : memref<16x16xi8, #tpu.memory_space<vmem>>, vector<16x16xi8>
    %20 = arith.sitofp %19 : vector<16x16xi8> to vector<16x16xf32>
    %c0_11 = arith.constant 0 : index
    %c0_12 = arith.constant 0 : index
    %21 = vector.load %arg6[%c0_11, %c0_12] : memref<16x16xi8, #tpu.memory_space<vmem>>, vector<16x16xi8>
    %22 = arith.sitofp %21 : vector<16x16xi8> to vector<16x16xf32>
    %c0_13 = arith.constant 0 : index
    %c0_14 = arith.constant 0 : index
    %23 = vector.load %arg7[%c0_13, %c0_14] : memref<16x16xi8, #tpu.memory_space<vmem>>, vector<16x16xi8>
    %24 = arith.sitofp %23 : vector<16x16xi8> to vector<16x16xf32>
    %c0_15 = arith.constant 0 : index
    %c0_16 = arith.constant 0 : index
    %25 = vector.load %arg8[%c0_15, %c0_16] : memref<16x16xi8, #tpu.memory_space<vmem>>, vector<16x16xi8>
    %26 = arith.sitofp %25 : vector<16x16xi8> to vector<16x16xf32>
    %27 = math.exp %18 : vector<16x16xf32>
    %28 = arith.addf %20, %22 : vector<16x16xf32>
    %29 = arith.mulf %27, %28 : vector<16x16xf32>
    %cst_17 = arith.constant dense<0.000000e+00> : vector<16xf32>
    %30 = vector.multi_reduction <add>, %29, %cst_17 [1] : vector<16x16xf32> to vector<16xf32>
    %31 = vector.shape_cast %30 : vector<16xf32> to vector<16x1xf32>
    %32 = arith.mulf %20, %18 : vector<16x16xf32>
    %cst_18 = arith.constant dense<0.000000e+00> : vector<16xf32>
    %33 = vector.multi_reduction <add>, %32, %cst_18 [1] : vector<16x16xf32> to vector<16xf32>
    %34 = vector.shape_cast %33 : vector<16xf32> to vector<16x1xf32>
    %cst_19 = arith.constant dense<0.000000e+00> : vector<16xf32>
    %35 = vector.multi_reduction <add>, %20, %cst_19 [1] : vector<16x16xf32> to vector<16xf32>
    %36 = vector.shape_cast %35 : vector<16xf32> to vector<16x1xf32>
    %37 = arith.mulf %22, %18 : vector<16x16xf32>
    %cst_20 = arith.constant dense<0.000000e+00> : vector<16xf32>
    %38 = vector.multi_reduction <add>, %37, %cst_20 [1] : vector<16x16xf32> to vector<16xf32>
    %39 = vector.shape_cast %38 : vector<16xf32> to vector<16x1xf32>
    %40 = arith.mulf %24, %18 : vector<16x16xf32>
    %cst_21 = arith.constant dense<0.000000e+00> : vector<16xf32>
    %41 = vector.multi_reduction <add>, %40, %cst_21 [1] : vector<16x16xf32> to vector<16xf32>
    %42 = vector.shape_cast %41 : vector<16xf32> to vector<16x1xf32>
    %43 = arith.mulf %26, %18 : vector<16x16xf32>
    %cst_22 = arith.constant dense<0.000000e+00> : vector<16xf32>
    %44 = vector.multi_reduction <add>, %43, %cst_22 [1] : vector<16x16xf32> to vector<16xf32>
    %45 = vector.shape_cast %44 : vector<16xf32> to vector<16x1xf32>
    %cst_23 = arith.constant 0.000000e+00 : f32
    %46 = vector.broadcast %cst_23 : f32 to vector<16x1xf32>
    %c0_24 = arith.constant 0 : index
    %c0_25 = arith.constant 0 : index
    %47 = vector.load %arg10[%c0_24, %c0_25] : memref<16x8xf32, #tpu.memory_space<vmem>>, vector<16x8xf32>
    %48 = tpu.concatenate %31, %34, %36, %39, %42, %45, %46, %46 in 1 : vector<16x1xf32>, vector<16x1xf32>, vector<16x1xf32>, vector<16x1xf32>, vector<16x1xf32>, vector<16x1xf32>, vector<16x1xf32>, vector<16x1xf32> -> vector<16x8xf32>
    %49 = arith.addf %47, %48 : vector<16x8xf32>
    %c0_26 = arith.constant 0 : index
    %c0_27 = arith.constant 0 : index
    %50 = vector.load %arg10[%c0_26, %c0_27] : memref<16x8xf32, #tpu.memory_space<vmem>>, vector<16x8xf32>
    tpu.vector_store %arg10[%c0_26, %c0_27], %49 {strides = array<i32>} : memref<16x8xf32, #tpu.memory_space<vmem>>, vector<16x8xf32>,
    %c0_i32_28 = arith.constant 0 : i32
    %51 = arith.cmpi eq, %arg2, %c0_i32_28 : i32
    %52 = arith.extui %51 : i1 to i32
    %c0_i32_29 = arith.constant 0 : i32
    %53 = arith.cmpi ne, %52, %c0_i32_29 : i32
    scf.if %53 {
      %c0_30 = arith.constant 0 : index
      %c0_31 = arith.constant 0 : index
      %54 = vector.load %arg10[%c0_30, %c0_31] : memref<16x8xf32, #tpu.memory_space<vmem>>, vector<16x8xf32>
      %55 = vector.extract_strided_slice %54 {offsets = [0, 0], sizes = [16, 1], strides = [1, 1]} : vector<16x8xf32> to vector<16x1xf32>
      %56 = vector.extract_strided_slice %54 {offsets = [0, 1], sizes = [16, 1], strides = [1, 1]} : vector<16x8xf32> to vector<16x1xf32>
      %57 = vector.extract_strided_slice %54 {offsets = [0, 2], sizes = [16, 1], strides = [1, 1]} : vector<16x8xf32> to vector<16x1xf32>
      %58 = vector.extract_strided_slice %54 {offsets = [0, 3], sizes = [16, 1], strides = [1, 1]} : vector<16x8xf32> to vector<16x1xf32>
      %59 = vector.extract_strided_slice %54 {offsets = [0, 4], sizes = [16, 1], strides = [1, 1]} : vector<16x8xf32> to vector<16x1xf32>
      %60 = vector.extract_strided_slice %54 {offsets = [0, 5], sizes = [16, 1], strides = [1, 1]} : vector<16x8xf32> to vector<16x1xf32>
      %61 = math.log %55 : vector<16x1xf32>
      %62 = arith.divf %56, %57 : vector<16x1xf32>
      %63 = arith.subf %61, %62 : vector<16x1xf32>
      %64 = vector.shape_cast %63 : vector<16x1xf32> to vector<1x16x1xf32>
      %cst_32 = arith.constant dense<0.000000e+00> : vector<1xf32>
      %65 = vector.multi_reduction <add>, %64, %cst_32 [1, 2] : vector<1x16x1xf32> to vector<1xf32>
      %66 = vector.shape_cast %65 : vector<1xf32> to vector<1x1x1xf32>
      %67 = vector.extract %66[0, 0, 0] : f32 from vector<1x1x1xf32>
      %68 = vector.broadcast %67 : f32 to vector<1x1xf32>
      %69 = vector.shape_cast %56 : vector<16x1xf32> to vector<1x16x1xf32>
      %cst_33 = arith.constant dense<0.000000e+00> : vector<1xf32>
      %70 = vector.multi_reduction <add>, %69, %cst_33 [1, 2] : vector<1x16x1xf32> to vector<1xf32>
      %71 = vector.shape_cast %70 : vector<1xf32> to vector<1x1x1xf32>
      %72 = vector.extract %71[0, 0, 0] : f32 from vector<1x1x1xf32>
      %73 = vector.broadcast %72 : f32 to vector<1x1xf32>
      %74 = vector.shape_cast %58 : vector<16x1xf32> to vector<1x16x1xf32>
      %cst_34 = arith.constant dense<0.000000e+00> : vector<1xf32>
      %75 = vector.multi_reduction <add>, %74, %cst_34 [1, 2] : vector<1x16x1xf32> to vector<1xf32>
      %76 = vector.shape_cast %75 : vector<1xf32> to vector<1x1x1xf32>
      %77 = vector.extract %76[0, 0, 0] : f32 from vector<1x1x1xf32>
      %78 = vector.broadcast %77 : f32 to vector<1x1xf32>
      %79 = vector.shape_cast %59 : vector<16x1xf32> to vector<1x16x1xf32>
      %cst_35 = arith.constant dense<0.000000e+00> : vector<1xf32>
      %80 = vector.multi_reduction <add>, %79, %cst_35 [1, 2] : vector<1x16x1xf32> to vector<1xf32>
      %81 = vector.shape_cast %80 : vector<1xf32> to vector<1x1x1xf32>
      %82 = vector.extract %81[0, 0, 0] : f32 from vector<1x1x1xf32>
      %83 = vector.broadcast %82 : f32 to vector<1x1xf32>
      %84 = vector.shape_cast %60 : vector<16x1xf32> to vector<1x16x1xf32>
      %cst_36 = arith.constant dense<0.000000e+00> : vector<1xf32>
      %85 = vector.multi_reduction <add>, %84, %cst_36 [1, 2] : vector<1x16x1xf32> to vector<1xf32>
      %86 = vector.shape_cast %85 : vector<1xf32> to vector<1x1x1xf32>
      %87 = vector.extract %86[0, 0, 0] : f32 from vector<1x1x1xf32>
      %88 = vector.broadcast %87 : f32 to vector<1x1xf32>
      %89 = tpu.concatenate %68, %73, %78, %83, %88 in 1 : vector<1x1xf32>, vector<1x1xf32>, vector<1x1xf32>, vector<1x1xf32>, vector<1x1xf32> -> vector<1x5xf32>
      %c0_37 = arith.constant 0 : index
      %c0_38 = arith.constant 0 : index
      %90 = vector.load %arg9[%c0_37, %c0_38] : memref<8x128xf32, #tpu.memory_space<vmem>>, vector<1x5xf32>
      %91 = arith.addf %90, %89 : vector<1x5xf32>
      %c0_39 = arith.constant 0 : index
      %c0_40 = arith.constant 0 : index
      %92 = vector.load %arg9[%c0_39, %c0_40] : memref<8x128xf32, #tpu.memory_space<vmem>>, vector<1x5xf32>
      tpu.vector_store %arg9[%c0_39, %c0_40], %91 {strides = array<i32>} : memref<8x128xf32, #tpu.memory_space<vmem>>, vector<1x5xf32>,
    } else {
    }
    return
  }
  func.func @transform_0(%arg0: i32, %arg1: i32, %arg2: i32) -> (i32, i32) {
    %c1_i32 = arith.constant 1 : i32
    %0 = arith.muli %arg0, %c1_i32 : i32
    %1 = arith.addi %0, %arg1 : i32
    %c0_i32 = arith.constant 0 : i32
    %c0_i32_0 = arith.constant 0 : i32
    return %1, %c0_i32 : i32, i32
  }
  func.func @transform_1(%arg0: i32, %arg1: i32, %arg2: i32) -> (i32, i32) {
    %c0_i32 = arith.constant 0 : i32
    %c0_i32_0 = arith.constant 0 : i32
    return %arg2, %c0_i32 : i32, i32
  }
  func.func @transform_2(%arg0: i32, %arg1: i32, %arg2: i32) -> (i32, i32) {
    %c1_i32 = arith.constant 1 : i32
    %0 = arith.muli %arg0, %c1_i32 : i32
    %1 = arith.addi %0, %arg1 : i32
    %c0_i32 = arith.constant 0 : i32
    return %1, %arg2 : i32, i32
  }
  func.func @transform_3(%arg0: i32, %arg1: i32, %arg2: i32) -> (i32, i32) {
    %c1_i32 = arith.constant 1 : i32
    %0 = arith.muli %arg0, %c1_i32 : i32
    %1 = arith.addi %0, %arg1 : i32
    %c0_i32 = arith.constant 0 : i32
    return %1, %arg2 : i32, i32
  }
  func.func @transform_4(%arg0: i32, %arg1: i32, %arg2: i32) -> (i32, i32) {
    %c1_i32 = arith.constant 1 : i32
    %0 = arith.muli %arg0, %c1_i32 : i32
    %1 = arith.addi %0, %arg1 : i32
    %c0_i32 = arith.constant 0 : i32
    return %1, %arg2 : i32, i32
  }
  func.func @transform_5(%arg0: i32, %arg1: i32, %arg2: i32) -> (i32, i32) {
    %c1_i32 = arith.constant 1 : i32
    %0 = arith.muli %arg0, %c1_i32 : i32
    %1 = arith.addi %0, %arg1 : i32
    %c0_i32 = arith.constant 0 : i32
    return %1, %arg2 : i32, i32
  }
  func.func @transform_6(%arg0: i32, %arg1: i32, %arg2: i32) -> (i32, i32) {
    %c0_i32 = arith.constant 0 : i32
    %c0_i32_0 = arith.constant 0 : i32
    return %arg0, %c0_i32 : i32, i32
  }
}

</mosaic_0001>

<llo_original>
// kernel: tpu_custom_call.1
$region0: #{tpu_custom_call.1}
  #allocation0 [shape = 'u32[]', space=smem, size = 0x4, offset = 0x4, fixed_abs, tag = 'smem constant byte address 0x4 - core index']
  #allocation1 [shape = 'u32[72,128]{1,0:T(1,128)}', space=vmem, size = 0x9000, scoped, tag = 'internal scratch']
  #allocation2 [shape = 'f32[16,8]{1,0:T(8,128)}', space=vmem, size = 0x2000, scoped, tag = 'scratch operand']
  %s0 = inlined_call_operand.hbm [shape: f32[16,32], index: 0, kind: input, shape index: {}]
  %s1 = inlined_call_operand.hbm [shape: f32[16,32], index: 1, kind: input, shape index: {}]
  %s2 = inlined_call_operand.hbm [shape: s8[16,16], index: 2, kind: input, shape index: {}]
  %s3 = inlined_call_operand.hbm [shape: s8[16,16], index: 3, kind: input, shape index: {}]
  %s4 = inlined_call_operand.hbm [shape: s8[16,16], index: 4, kind: input, shape index: {}]
  %s5 = inlined_call_operand.vmem [shape: s8[16,16], index: 5, kind: input, shape index: {}]
  %s6 = inlined_call_operand.hbm [shape: f32[8,128], index: 6, kind: output, shape index: {}]
  %s7 = sld [smem:[#allocation0]]
  $region66: #{tpu_custom_call.1} parent=0
    _
  %s9 = ssub.s32 1, %s7
  %s10 = scalar_select 0, %s9, %s7
  $region1: #{tpu_custom_call.1} parent=0
    #allocation3 [shape = 'u8[8192]{0}', space=vmem, size = 0x2000, scoped, tag = 'input window, operand 0, single buffered']
    #allocation4 [shape = 's32[1]{0}', space=sflag, size = 0x4, scoped, tag = 'scoped memory for tpu_custom_call.1']
    #allocation5 [shape = 's32[1]{0}', space=sflag, size = 0x4, scoped, tag = 'scoped memory for tpu_custom_call.1']
    #allocation6 [shape = 'u8[8192]{0}', space=vmem, size = 0x2000, scoped, tag = 'input window, operand 1, single buffered']
    #allocation7 [shape = 's32[1]{0}', space=sflag, size = 0x4, scoped, tag = 'scoped memory for tpu_custom_call.1']
    #allocation8 [shape = 'u8[2048]{0}', space=vmem, size = 0x800, scoped, tag = 'input window, operand 2, single buffered']
    #allocation9 [shape = 'u8[2048]{0}', space=vmem, size = 0x800, scoped, tag = 'input window, operand 3, single buffered']
    #allocation10 [shape = 's32[1]{0}', space=sflag, size = 0x4, scoped, tag = 'scoped memory for tpu_custom_call.1']
    #allocation11 [shape = 'u8[2048]{0}', space=vmem, size = 0x800, scoped, tag = 'input window, operand 4, single buffered']
    #allocation12 [shape = 'u8[4096]{0}', space=vmem, size = 0x1000, scoped, tag = 'output window, operand 0, single buffered']
    %11 = vsyncpa [#allocation4], 0
    %12 = vsyncpa [#allocation7], 0
    %13 = vsyncpa [#allocation10], 0
    %14 = vsyncpa [#allocation5], 0
    // Predicated region
    $region2: #{tpu_custom_call.1} parent=1 // pred_check
      _
    $region3: #{tpu_custom_call.1} parent=1 // pred_check_branch
      %16 = sbr.rel (0) target = $region5
    $region4: #{tpu_custom_call.1} parent=1 // pred_region
      %s17 = sadd.s32 0, 0
      %s18 = smul.u32 2, %s17
      %20 = vsyncadd [#allocation4], 0
      %s21 = smul.addr %s18, 8
      %s22 = scalar_lea.hbm %s0, %s21
      %s23 = sshll.u32 %s22, 4
      %s24 = int_to_ptr.hbm [resolvable:$true] %s23
      %s25 = sshll.u32 [#allocation3], 4
      %s26 = int_to_ptr.vmem [resolvable:$true] %s25
      %31 = dma.hbm_to_vmem [thread:$0]  %s24, 256, %s26, [#allocation4], 128, 128, 8
    $region5: #{tpu_custom_call.1} parent=1 // pred_fallthru
      _
    // Predicated region
    $region6: #{tpu_custom_call.1} parent=1 // pred_check
      _
    $region7: #{tpu_custom_call.1} parent=1 // pred_check_branch
      %33 = sbr.rel (0) target = $region9
    $region8: #{tpu_custom_call.1} parent=1 // pred_region
      %35 = vsyncadd [#allocation7], 0
      %s36 = sshll.u32 %s1, 4
      %s37 = int_to_ptr.hbm [resolvable:$true] %s36
      %s38 = sshll.u32 [#allocation6], 4
      %s39 = int_to_ptr.vmem [resolvable:$true] %s38
      %44 = dma.hbm_to_vmem [thread:$0]  %s37, 256, %s39, [#allocation7], 128, 128, 8
    $region9: #{tpu_custom_call.1} parent=1 // pred_fallthru
      _
    // Predicated region
    $region10: #{tpu_custom_call.1} parent=1 // pred_check
      _
    $region11: #{tpu_custom_call.1} parent=1 // pred_check_branch
      %46 = sbr.rel (0) target = $region13
    $region12: #{tpu_custom_call.1} parent=1 // pred_region
      %s47 = sadd.s32 0, 0
      %s48 = smul.u32 2, %s47
      %50 = vsyncadd [#allocation7], 0
      %s51 = smul.addr %s48, 2
      %s52 = scalar_lea.hbm %s2, %s51
      %s53 = sshll.u32 %s52, 4
      %s54 = int_to_ptr.hbm [resolvable:$true] %s53
      %s55 = sshll.u32 [#allocation8], 4
      %s56 = int_to_ptr.vmem [resolvable:$true] %s55
      %61 = dma.hbm_to_vmem [thread:$0]  %s54, 64, %s56, [#allocation7], 32, 32, 2
    $region13: #{tpu_custom_call.1} parent=1 // pred_fallthru
      _
    // Predicated region
    $region14: #{tpu_custom_call.1} parent=1 // pred_check
      _
    $region15: #{tpu_custom_call.1} parent=1 // pred_check_branch
      %63 = sbr.rel (0) target = $region17
    $region16: #{tpu_custom_call.1} parent=1 // pred_region
      %s64 = sadd.s32 0, 0
      %s65 = smul.u32 2, %s64
      %67 = vsyncadd [#allocation10], 0
      %s68 = smul.addr %s65, 2
      %s69 = scalar_lea.hbm %s3, %s68
      %s70 = sshll.u32 %s69, 4
      %s71 = int_to_ptr.hbm [resolvable:$true] %s70
      %s72 = sshll.u32 [#allocation9], 4
      %s73 = int_to_ptr.vmem [resolvable:$true] %s72
      %78 = dma.hbm_to_vmem [thread:$0]  %s71, 64, %s73, [#allocation10], 32, 32, 2
    $region17: #{tpu_custom_call.1} parent=1 // pred_fallthru
      _
    // Predicated region
    $region18: #{tpu_custom_call.1} parent=1 // pred_check
      _
    $region19: #{tpu_custom_call.1} parent=1 // pred_check_branch
      %80 = sbr.rel (0) target = $region21
    $region20: #{tpu_custom_call.1} parent=1 // pred_region
      %s81 = sadd.s32 0, 0
      %s82 = smul.u32 2, %s81
      %84 = vsyncadd [#allocation10], 0
      %s85 = smul.addr %s82, 2
      %s86 = scalar_lea.hbm %s4, %s85
      %s87 = sshll.u32 %s86, 4
      %s88 = int_to_ptr.hbm [resolvable:$true] %s87
      %s89 = sshll.u32 [#allocation11], 4
      %s90 = int_to_ptr.vmem [resolvable:$true] %s89
      %95 = dma.hbm_to_vmem [thread:$0]  %s88, 64, %s90, [#allocation10], 32, 32, 2
    $region21: #{tpu_custom_call.1} parent=1 // pred_fallthru
      _
    // Predicated region
    $region22: #{tpu_custom_call.1} parent=1 // pred_check
      _
    $region23: #{tpu_custom_call.1} parent=1 // pred_check_branch
      %97 = sbr.rel (0) target = $region25
    $region24: #{tpu_custom_call.1} parent=1 // pred_region
      %s98 = sadd.s32 0, 0
      %s99 = smul.u32 2, %s98
      %p100 = scmp.lt.s32.totalorder %s99, 1
      %s101 = scalar_select %p100, %s99, 1
      %s102 = smul.addr %s101, 2
      %s103 = scalar_lea.vmem %s5, %s102
      %s104 = sadd.s32 0, 0
      %s105 = smul.u32 2, %s104
    $region25: #{tpu_custom_call.1} parent=1 // pred_fallthru
      _
    // Predicated region
    $region26: #{tpu_custom_call.1} parent=1 // pred_check
      _
    $region27: #{tpu_custom_call.1} parent=1 // pred_check_branch
      %107 = sbr.rel (0) target = $region29
    $region28: #{tpu_custom_call.1} parent=1 // pred_region
      %109 = dma.done [#allocation4], 256
    $region29: #{tpu_custom_call.1} parent=1 // pred_fallthru
      _
    // Predicated region
    $region30: #{tpu_custom_call.1} parent=1 // pred_check
      _
    $region31: #{tpu_custom_call.1} parent=1 // pred_check_branch
      %111 = sbr.rel (0) target = $region33
    $region32: #{tpu_custom_call.1} parent=1 // pred_region
      %113 = dma.done [#allocation7], 256
    $region33: #{tpu_custom_call.1} parent=1 // pred_fallthru
      _
    // Predicated region
    $region34: #{tpu_custom_call.1} parent=1 // pred_check
      _
    $region35: #{tpu_custom_call.1} parent=1 // pred_check_branch
      %115 = sbr.rel (0) target = $region37
    $region36: #{tpu_custom_call.1} parent=1 // pred_region
      %117 = dma.done [#allocation7], 64
    $region37: #{tpu_custom_call.1} parent=1 // pred_fallthru
      _
    // Predicated region
    $region38: #{tpu_custom_call.1} parent=1 // pred_check
      _
    $region39: #{tpu_custom_call.1} parent=1 // pred_check_branch
      %119 = sbr.rel (0) target = $region41
    $region40: #{tpu_custom_call.1} parent=1 // pred_region
      %121 = dma.done [#allocation10], 64
    $region41: #{tpu_custom_call.1} parent=1 // pred_fallthru
      _
    // Predicated region
    $region42: #{tpu_custom_call.1} parent=1 // pred_check
      _
    $region43: #{tpu_custom_call.1} parent=1 // pred_check_branch
      %123 = sbr.rel (0) target = $region45
    $region44: #{tpu_custom_call.1} parent=1 // pred_region
      %125 = dma.done [#allocation10], 64
    $region45: #{tpu_custom_call.1} parent=1 // pred_fallthru
      _
    %s126 = sadd.s32 0, 0
    %s127 = smul.u32 2, %s126
    %p128 = scmp.lt.s32.totalorder %s127, 1
    %s129 = scalar_select %p128, %s127, 1
    %s130 = smul.addr %s129, 2
    %s131 = scalar_lea.vmem %s5, %s130
    %s132 = sadd.s32 0, 0
    %s133 = smul.u32 2, %s132
    %s134 = sadd.s32 0, 0
    %s135 = smul.u32 2, %s134
    %s136 = sadd.s32 0, 0
    %s137 = smul.u32 2, %s136
    %s138 = sadd.s32 0, 0
    %s139 = smul.u32 2, %s138
    %s140 = sadd.s32 0, 0
    %s141 = smul.u32 2, %s140
    %p142 = scmp.lt.s32.totalorder %s141, 1
    %s143 = scalar_select %p142, %s141, 1
    %s144 = smul.addr %s143, 2
    %s145 = scalar_lea.vmem %s5, %s144
    %s146 = sadd.s32 0, 0
    %s147 = smul.u32 2, %s146
    %p148 = scmp.eq.s32.totalorder 0, 0
    %p149 = scmp.eq.s32.totalorder 0, 0
    %p150 = pnand %p148, %p149
    %p151 = pneg %p150
    // Predicated region
    $region46: #{tpu_custom_call.1} parent=1 // pred_check
      _
    $region47: #{tpu_custom_call.1} parent=1 // pred_check_branch
      %153 = sbr.rel (%p150) target = $region49
    $region48: #{tpu_custom_call.1} parent=1 // pred_region
      %154 = vst [vmem:[#allocation12] sm:$0xff] 0.0
    $region49: #{tpu_custom_call.1} parent=1 // pred_fallthru
      _
    // Predicated region
    $region50: #{tpu_custom_call.1} parent=1 // pred_check
      %p155 = pneg %p149
    $region51: #{tpu_custom_call.1} parent=1 // pred_check_branch
      %157 = sbr.rel (%p155) target = $region53
    $region52: #{tpu_custom_call.1} parent=1 // pred_region
      %vm158 = vcmask 64512
      %159 = vst.msk [vmem:[#allocation2] sm:$0xff] %vm158, 0.0
      %160 = vst.msk [vmem:[#allocation2 + $0x8] sm:$0xff] %vm158, 0.0
    $region53: #{tpu_custom_call.1} parent=1 // pred_fallthru
      _
    %v161 = vld [vmem:[#allocation3] sm:$0xff]
    %v162 = vld [vmem:[#allocation3 + $0x8] sm:$0xff]
    %v163 = vld [vmem:[#allocation6] sm:$0xff]
    %v164 = vld [vmem:[#allocation6 + $0x8] sm:$0xff]
    %vm165 = vcmask 261120
    %v167 = vsel %vm165, %v161, 0
    %v170 = vsel %vm165, %v162, 0
    %v173 = vsel %vm165, %v163, 0
    %v176 = vsel %vm165, %v164, 0
    %178 = vmatpush.xpose.msra.mxu0 0.0
    %179 = vmatpush.xpose.msra.mxu0 0.0
    %180 = vmatpush.xpose.msra.mxu0 0.0
    %181 = vmatpush.xpose.msra.mxu0 0.0
    %182 = vmatpush.xpose.msra.mxu0 0.0
    %183 = vmatpush.xpose.msra.mxu0 0.0
    %184 = vmatpush.xpose.msra.mxu0 0.0
    %185 = vmatpush.xpose.msra.mxu0 0.0
    %186 = vmatpush.xpose.msra.mxu0 0.0
    %187 = vmatpush.xpose.msra.mxu0 0.0
    %188 = vmatpush.xpose.msra.mxu0 0.0
    %189 = vmatpush.xpose.msra.mxu0 0.0
    %190 = vmatpush.xpose.msra.mxu0 0.0
    %191 = vmatpush.xpose.msra.mxu0 0.0
    %192 = vmatpush.xpose.msra.mxu0 %v176
    %193 = vmatpush.xpose.msra.mxu0 %v173
    %194 = vmatmul.f32.gmra.mxu0 %v167
    %v195 = vpop.f32.mrf.mxu0
    %v196 = vadd.f32 0.0, %v195
    %197 = vmatmul.f32.gmra.mxu0 %v170
    %v198 = vpop.f32.mrf.mxu0
    %v199 = vadd.f32 0.0, %v198
    %200 = vdwg.mxu0
    %v201 = vmul.f32 %v161, %v161
    %v202 = vmul.f32 %v162, %v162
    %v203 = vsel %vm165, %v201, 0.0
    %204 = vadd.xlane.f32.xlu0 %v203
    %v205 = vpop.xlane.xlu0 %204
    %v206 = vsel %vm165, %v202, 0.0
    %207 = vadd.xlane.f32.xlu0 %v206
    %v208 = vpop.xlane.xlu0 %207
    %v209 = vsub.f32 %v196, %v205
    %v210 = vsub.f32 %v199, %v208
    %v211 = vmul.f32 %v209, 1.442695
    %v212 = vpow.pop %v211
    %v213 = vmul.f32 %v210, 1.442695
    %v214 = vpow.pop %v213
    %v215 = vld [vmem:[#allocation8] sm:$0x3]
    %v216 = vld [vmem:[#allocation8 + $0x2] sm:$0x3]
    %v217 = vunpack.c.0.s8 %v215
    %v218 = vunpack.c.0.s8 %v216
    %v219 = vcvt.s32.f32 %v217
    %v220 = vcvt.s32.f32 %v218
    %v221 = vld [vmem:[#allocation9] sm:$0x3]
    %v222 = vld [vmem:[#allocation9 + $0x2] sm:$0x3]
    %v223 = vunpack.c.0.s8 %v221
    %v224 = vunpack.c.0.s8 %v222
    %v225 = vcvt.s32.f32 %v223
    %v226 = vcvt.s32.f32 %v224
    %v227 = vld [vmem:[#allocation11] sm:$0x3]
    %v228 = vld [vmem:[#allocation11 + $0x2] sm:$0x3]
    %v229 = vunpack.c.0.s8 %v227
    %v230 = vunpack.c.0.s8 %v228
    %v231 = vcvt.s32.f32 %v229
    %v232 = vcvt.s32.f32 %v230
    %v233 = vld [vmem:[%s145] sm:$0x3]
    %v234 = vld [vmem:[%s145 + $0x2] sm:$0x3]
    %v235 = vunpack.c.0.s8 %v233
    %v236 = vunpack.c.0.s8 %v234
    %v237 = vcvt.s32.f32 %v235
    %v238 = vcvt.s32.f32 %v236
    %v239 = vmul.f32 %v212, 1.442695
    %v240 = vpow.pop %v239
    %v241 = vmul.f32 %v214, 1.442695
    %v242 = vpow.pop %v241
    %v243 = vadd.f32 %v219, %v225
    %v244 = vadd.f32 %v220, %v226
    %v245 = vmul.f32 %v240, %v243
    %v246 = vmul.f32 %v242, %v244
    %vm247 = vcmask 130048
    %v248 = vsel %vm247, %v245, 0.0
    %249 = vadd.xlane.f32.xlu0 %v248
    %v250 = vpop.xlane.xlu0 %249
    %v251 = vsel %vm247, %v246, 0.0
    %252 = vadd.xlane.f32.xlu0 %v251
    %v253 = vpop.xlane.xlu0 %252
    %v254 = vmul.f32 %v219, %v212
    %v255 = vmul.f32 %v220, %v214
    %v256 = vsel %vm247, %v254, 0.0
    %257 = vadd.xlane.f32.xlu0 %v256
    %v258 = vpop.xlane.xlu0 %257
    %v259 = vsel %vm247, %v255, 0.0
    %260 = vadd.xlane.f32.xlu0 %v259
    %v261 = vpop.xlane.xlu0 %260
    %v262 = vsel %vm247, %v219, 0.0
    %263 = vadd.xlane.f32.xlu0 %v262
    %v264 = vpop.xlane.xlu0 %263
    %v265 = vsel %vm247, %v220, 0.0
    %266 = vadd.xlane.f32.xlu0 %v265
    %v267 = vpop.xlane.xlu0 %266
    %v268 = vmul.f32 %v225, %v212
    %v269 = vmul.f32 %v226, %v214
    %v270 = vsel %vm247, %v268, 0.0
    %271 = vadd.xlane.f32.xlu0 %v270
    %v272 = vpop.xlane.xlu0 %271
    %v273 = vsel %vm247, %v269, 0.0
    %274 = vadd.xlane.f32.xlu0 %v273
    %v275 = vpop.xlane.xlu0 %274
    %v276 = vmul.f32 %v231, %v212
    %v277 = vmul.f32 %v232, %v214
    %v278 = vsel %vm247, %v276, 0.0
    %279 = vadd.xlane.f32.xlu0 %v278
    %v280 = vpop.xlane.xlu0 %279
    %v281 = vsel %vm247, %v277, 0.0
    %282 = vadd.xlane.f32.xlu0 %v281
    %v283 = vpop.xlane.xlu0 %282
    %v284 = vmul.f32 %v237, %v212
    %v285 = vmul.f32 %v238, %v214
    %v286 = vsel %vm247, %v284, 0.0
    %287 = vadd.xlane.f32.xlu0 %v286
    %v288 = vpop.xlane.xlu0 %287
    %v289 = vsel %vm247, %v285, 0.0
    %290 = vadd.xlane.f32.xlu0 %v289
    %v291 = vpop.xlane.xlu0 %290
    %v292 = vld [vmem:[#allocation2] sm:$0xff]
    %v293 = vld [vmem:[#allocation2 + $0x8] sm:$0xff]
    %vm294 = vcmask 7168
    %v295 = vsel %vm294, %v250, %v258
    %v296 = vsel %vm294, %v253, %v261
    %vm297 = vcmask 15360
    %v298 = vsel %vm297, %v295, %v264
    %v299 = vsel %vm297, %v296, %v267
    %vm300 = vcmask 23552
    %v301 = vsel %vm300, %v298, %v272
    %v302 = vsel %vm300, %v299, %v275
    %vm303 = vcmask 31744
    %v304 = vsel %vm303, %v301, %v280
    %v305 = vsel %vm303, %v302, %v283
    %vm306 = vcmask 39936
    %v307 = vsel %vm306, %v304, %v288
    %v308 = vsel %vm306, %v305, %v291
    %vm309 = vcmask 48128
    %v310 = vsel %vm309, %v307, 0.0
    %v311 = vsel %vm309, %v308, 0.0
    %vm312 = vcmask 56320
    %v313 = vsel %vm312, %v310, 0.0
    %v314 = vsel %vm312, %v311, 0.0
    %v315 = vadd.f32 %v292, %v313
    %v316 = vadd.f32 %v293, %v314
    %vm317 = vcmask 64512
    %318 = vst.msk [vmem:[#allocation2] sm:$0xff] %vm317, %v315
    %319 = vst.msk [vmem:[#allocation2 + $0x8] sm:$0xff] %vm317, %v316
    // Predicated region
    $region54: #{tpu_custom_call.1} parent=1 // pred_check
      %p320 = pneg %p149
    $region55: #{tpu_custom_call.1} parent=1 // pred_check_branch
      %322 = sbr.rel (%p320) target = $region57
    $region56: #{tpu_custom_call.1} parent=1 // pred_region
      %v323 = vld [vmem:[#allocation2] sm:$0xff]
      %v324 = vld [vmem:[#allocation2 + $0x8] sm:$0xff]
      %v325 = vlog2.pop %v323
      %v326 = vmul.f32 %v325, 0.6931472
      %v327 = vlog2.pop %v324
      %v328 = vmul.f32 %v327, 0.6931472
      %331 = vrot.lane.b32.xlu0 %v323, 127
      %v332 = vpop.permute.xlu0 %331
      %333 = vrot.lane.b32.xlu0 %v324, 127
      %v334 = vpop.permute.xlu0 %333
      %v337 = vrcp.pop %v332
      %v338 = vmul.f32 %v332, %v337
      %v339 = vsub.f32 1.0, %v338
      %v340 = vmul.f32 %v337, %v339
      %v341 = vadd.f32 %v337, %v340
      %vm342 = vweird.f32 %v332
      %vm343 = vweird.f32 %v337
      %vm344 = vmor %vm342, %vm343
      %v345 = vsel %vm344, %v337, %v341
      %v346 = vand.u32 2147483647, %v332
      %vm347 = vcmp.eq.f32.partialorder %v346, 8.507059e+37
      %v348 = vand.u32 %v332, 2147483648
      %v349 = vor.u32 1.1754944e-38, %v348
      %v350 = vsel %vm347, %v349, %v345
      %v351 = vmul.f32 %v323, %v350
      %v352 = vrcp.pop %v334
      %v353 = vmul.f32 %v334, %v352
      %v354 = vsub.f32 1.0, %v353
      %v355 = vmul.f32 %v352, %v354
      %v356 = vadd.f32 %v352, %v355
      %vm357 = vweird.f32 %v334
      %vm358 = vweird.f32 %v352
      %vm359 = vmor %vm357, %vm358
      %v360 = vsel %vm359, %v352, %v356
      %v361 = vand.u32 2147483647, %v334
      %vm362 = vcmp.eq.f32.partialorder %v361, 8.507059e+37
      %v363 = vand.u32 %v334, 2147483648
      %v364 = vor.u32 1.1754944e-38, %v363
      %v365 = vsel %vm362, %v364, %v360
      %v366 = vmul.f32 %v324, %v365
      %369 = vrot.lane.b32.xlu0 %v351, 127
      %v370 = vpop.permute.xlu0 %369
      %371 = vrot.lane.b32.xlu0 %v366, 127
      %v372 = vpop.permute.xlu0 %371
      %v375 = vsub.f32 %v326, %v370
      %v376 = vsub.f32 %v328, %v372
      %v377 = vsel %vm294, %v375, 0.0
      %v378 = vsel %vm294, %v376, 0.0
      %v379 = vadd.f32 %v377, %v378
      %380 = vadd.xlane.f32.xlu0 %v379
      %v381 = vpop.xlane.xlu0 %380
      %v382 = vrot.slane %v381, 4
      %v383 = vadd.f32 %v381, %v382
      %v384 = vrot.slane %v383, 2
      %v385 = vadd.f32 %v383, %v384
      %v386 = vrot.slane %v385, 1
      %v387 = vadd.f32 %v385, %v386
      %s388 = vtos %v387
      %v389 = vstv %s388
      %v390 = vsel %vm294, %v332, 0.0
      %v391 = vsel %vm294, %v334, 0.0
      %v392 = vadd.f32 %v390, %v391
      %393 = vadd.xlane.f32.xlu0 %v392
      %v394 = vpop.xlane.xlu0 %393
      %v395 = vrot.slane %v394, 4
      %v396 = vadd.f32 %v394, %v395
      %v397 = vrot.slane %v396, 2
      %v398 = vadd.f32 %v396, %v397
      %v399 = vrot.slane %v398, 1
      %v400 = vadd.f32 %v398, %v399
      %s401 = vtos %v400
      %v402 = vstv %s401
      %403 = vrot.lane.b32.xlu0 %v323, 125
      %v404 = vpop.permute.xlu0 %403
      %405 = vrot.lane.b32.xlu0 %v324, 125
      %v406 = vpop.permute.xlu0 %405
      %v409 = vsel %vm294, %v404, 0.0
      %v410 = vsel %vm294, %v406, 0.0
      %v411 = vadd.f32 %v409, %v410
      %412 = vadd.xlane.f32.xlu0 %v411
      %v413 = vpop.xlane.xlu0 %412
      %v414 = vrot.slane %v413, 4
      %v415 = vadd.f32 %v413, %v414
      %v416 = vrot.slane %v415, 2
      %v417 = vadd.f32 %v415, %v416
      %v418 = vrot.slane %v417, 1
      %v419 = vadd.f32 %v417, %v418
      %s420 = vtos %v419
      %v421 = vstv %s420
      %422 = vrot.lane.b32.xlu0 %v323, 124
      %v423 = vpop.permute.xlu0 %422
      %424 = vrot.lane.b32.xlu0 %v324, 124
      %v425 = vpop.permute.xlu0 %424
      %v428 = vsel %vm294, %v423, 0.0
      %v429 = vsel %vm294, %v425, 0.0
      %v430 = vadd.f32 %v428, %v429
      %431 = vadd.xlane.f32.xlu0 %v430
      %v432 = vpop.xlane.xlu0 %431
      %v433 = vrot.slane %v432, 4
      %v434 = vadd.f32 %v432, %v433
      %v435 = vrot.slane %v434, 2
      %v436 = vadd.f32 %v434, %v435
      %v437 = vrot.slane %v436, 1
      %v438 = vadd.f32 %v436, %v437
      %s439 = vtos %v438
      %v440 = vstv %s439
      %441 = vrot.lane.b32.xlu0 %v323, 123
      %v442 = vpop.permute.xlu0 %441
      %443 = vrot.lane.b32.xlu0 %v324, 123
      %v444 = vpop.permute.xlu0 %443
      %v447 = vsel %vm294, %v442, 0.0
      %v448 = vsel %vm294, %v444, 0.0
      %v449 = vadd.f32 %v447, %v448
      %450 = vadd.xlane.f32.xlu0 %v449
      %v451 = vpop.xlane.xlu0 %450
      %v452 = vrot.slane %v451, 4
      %v453 = vadd.f32 %v451, %v452
      %v454 = vrot.slane %v453, 2
      %v455 = vadd.f32 %v453, %v454
      %v456 = vrot.slane %v455, 1
      %v457 = vadd.f32 %v455, %v456
      %s458 = vtos %v457
      %v459 = vstv %s458
      %v460 = vsel %vm294, %v389, %v402
      %v461 = vsel %vm297, %v460, %v421
      %v462 = vsel %vm300, %v461, %v440
      %v463 = vsel %vm303, %v462, %v459
      %v464 = vld [vmem:[#allocation12] sm:$0x1]
      %v465 = vadd.f32 %v464, %v463
      %vm466 = vcmask 32768
      %467 = vst.msk [vmem:[#allocation12] sm:$0x1] %vm466, %v465
    $region57: #{tpu_custom_call.1} parent=1 // pred_fallthru
      _
    // Predicated region
    $region58: #{tpu_custom_call.1} parent=1 // pred_check
      _
    $region59: #{tpu_custom_call.1} parent=1 // pred_check_branch
      %469 = sbr.rel (0) target = $region61
    $region60: #{tpu_custom_call.1} parent=1 // pred_region
      %471 = vsyncadd [#allocation5], 0
      %s473 = sshll.u32 [#allocation12], 4
      %s474 = int_to_ptr.vmem [resolvable:$true] %s473
      %s475 = sshll.u32 %s6, 4
      %s476 = int_to_ptr.hbm [resolvable:$true] %s475
      %478 = dma.vmem_to_hbm [thread:$0]  %s474, 128, %s476, [#allocation5]
    $region61: #{tpu_custom_call.1} parent=1 // pred_fallthru
      _
    // Predicated region
    $region62: #{tpu_custom_call.1} parent=1 // pred_check
      _
    $region63: #{tpu_custom_call.1} parent=1 // pred_check_branch
      %480 = sbr.rel (0) target = $region65
    $region64: #{tpu_custom_call.1} parent=1 // pred_region
      %482 = dma.done [#allocation5], 128
    $region65: #{tpu_custom_call.1} parent=1 // pred_fallthru
      _
    %483 = vsyncpa [#allocation4], 1
    %484 = vsyncpa [#allocation7], 1
    %485 = vsyncpa [#allocation10], 1
    %486 = vsyncpa [#allocation5], 1

</llo_original>
